<compile_context>
chip_gen: v5e
topology: v5e:2x2
jax: 0.10.0
libtpu: 0.0.40
codegen_flags: <defaults>
</compile_context>

<pallas_src>
import functools

import jax
import jax.numpy as jnp
from jax import lax
from jax.experimental import pallas as pl
from jax.experimental.pallas import tpu as pltpu


def _round_up(x, m):
    return ((x + m - 1) // m) * m


def _dense_kernel_direct(x_ref, w_ref, b_ref, o_ref):
    """f32-output path: accumulate straight into the resident output block."""
    k = pl.program_id(2)

    @pl.when(k == 0)
    def _():
        o_ref[...] = jnp.zeros_like(o_ref)

    # x_ref: (tm, tk), w_ref: (tn, tk)  [nn.Linear layout, no host transpose]
    o_ref[...] += lax.dot_general(
        x_ref[...],
        w_ref[...],
        dimension_numbers=(((1,), (1,)), ((), ())),
        preferred_element_type=jnp.float32,
    )

    @pl.when(k == pl.num_programs(2) - 1)
    def _():
        o_ref[...] = jnp.maximum(o_ref[...] + b_ref[...].astype(jnp.float32), 0.0)


def _dense_kernel_acc(x_ref, w_ref, b_ref, o_ref, acc_ref):
    """Generic path (non-f32 outputs): f32 VMEM accumulator, cast on epilogue."""
    k = pl.program_id(2)

    @pl.when(k == 0)
    def _():
        acc_ref[...] = jnp.zeros_like(acc_ref)

    acc_ref[...] += lax.dot_general(
        x_ref[...],
        w_ref[...],
        dimension_numbers=(((1,), (1,)), ((), ())),
        preferred_element_type=jnp.float32,
    )

    @pl.when(k == pl.num_programs(2) - 1)
    def _():
        y = acc_ref[...] + b_ref[...].astype(jnp.float32)
        o_ref[...] = jnp.maximum(y, 0.0).astype(o_ref.dtype)


@functools.partial(jax.jit, static_argnames=("tm", "tn", "tk", "use_bf16_matmul"))
def dense_layer_forward(x, w, b, *, tm=None, tn=None, tk=None, use_bf16_matmul=False):
    """relu(x @ W^T + b).  x: (..., K); w: (N, K) [nn.Linear layout]; b: (N,)."""
    orig_shape = x.shape
    K = orig_shape[-1]
    N = w.shape[0]
    x2d = x.reshape(-1, K)
    M = x2d.shape[0]
    out_dtype = x.dtype

    # ----- tile selection (adaptive; minimal padding) -----------------------
    # HBM traffic ~ M*K*(Np/tn) + K*N*(Mp/tm): put the big tile on the axis
    # opposite the dominant operand. Tiled N/K tiles stay multiples of 256.
    if tk is None:
        tk = 512
    if tm is None or tn is None:
        if N >= M:                        # weight-dominated (typical MLP)
            tm_d, tn_d = 1024, 512
        else:                             # activation-dominated
            tm_d, tn_d = 512, 1024
        tm = tm_d if tm is None else tm
        tn = tn_d if tn is None else tn

    # K: full extent (no pad) if it fits one tile, else aligned tiles.
    if K <= tk:
        tk, Kp = K, K
    else:
        Kp = _round_up(K, tk)
    # N: full extent (no pad) if it fits one tile, else aligned tiles.
    if N <= tn:
        tn, Np = N, N
    else:
        Np = _round_up(N, tn)
    # M: only pad to the 8-row sublane granule unless tiling is required.
    if M <= tm:
        Mp = _round_up(M, 8)
        tm = Mp
    else:
        tm = _round_up(tm, 8)
        Mp = _round_up(M, tm)

    # ----- (minimal) zero-padding ------------------------------------------
    x_p = x2d if (Mp == M and Kp == K) else jnp.pad(x2d, ((0, Mp - M), (0, Kp - K)))
    w_p = w if (Np == N and Kp == K) else jnp.pad(w, ((0, Np - N), (0, Kp - K)))
    b_p = (b if Np == N else jnp.pad(b, (0, Np - N))).reshape(1, Np)

    if use_bf16_matmul:
        # bf16 MXU inputs (f32 accumulation kept): halves DMA bytes.
        x_p = x_p.astype(jnp.bfloat16)
        w_p = w_p.astype(jnp.bfloat16)

    grid = (Mp // tm, Np // tn, Kp // tk)

    direct = out_dtype == jnp.float32
    kernel = _dense_kernel_direct if direct else _dense_kernel_acc
    scratch_shapes = [] if direct else [pltpu.VMEM((tm, tn), jnp.float32)]

    out_p = pl.pallas_call(
        kernel,
        out_shape=jax.ShapeDtypeStruct((Mp, Np), out_dtype),
        grid_spec=pltpu.PrefetchScalarGridSpec(
            num_scalar_prefetch=0,
            grid=grid,
            in_specs=[
                pl.BlockSpec((tm, tk), lambda i, j, k: (i, k)),   # x  (M, K)
                pl.BlockSpec((tn, tk), lambda i, j, k: (j, k)),   # w  (N, K)
                pl.BlockSpec((1, tn), lambda i, j, k: (0, j)),    # bias
            ],
            out_specs=pl.BlockSpec((tm, tn), lambda i, j, k: (i, j)),
            scratch_shapes=scratch_shapes,
        ),
        compiler_params=pltpu.CompilerParams(
            dimension_semantics=("parallel", "parallel", "arbitrary"),
            vmem_limit_bytes=48 * 1024 * 1024,
        ),
    )(x_p, w_p, b_p)

    out = out_p if (Mp == M and Np == N) else out_p[:M, :N]
    return out.reshape(*orig_shape[:-1], N)


if __name__ == "__main__":
    key = jax.random.PRNGKey(0)
    kx, kw, kb = jax.random.split(key, 3)

    # Small shapes consistent with DenseLayer: batch=2, seq=8, in=32, out=64.
    in_channels, out_channels = 32, 64
    x = jax.random.normal(kx, (2, 8, in_channels), dtype=jnp.float32)
    # nn.Linear params: weight (out, in), bias (out,)
    bound = 1.0 / (in_channels ** 0.5)
    w = jax.random.uniform(
        kw, (out_channels, in_channels), dtype=jnp.float32, minval=-bound, maxval=bound
    )
    b = jax.random.uniform(
        kb, (out_channels,), dtype=jnp.float32, minval=-bound, maxval=bound
    )

    y = dense_layer_forward(x, w, b)
    jax.block_until_ready(y)

    # Reference: relu(x @ W^T + b)
    y_ref = jnp.maximum(jnp.einsum("bsk,nk->bsn", x, w) + b, 0.0)
    assert y.shape == y_ref.shape
    assert jnp.allclose(y, y_ref, atol=1e-4, rtol=1e-4)

    print("KERNEL_OK")
</pallas_src>

<mosaic_0001>
module attributes {stable_mosaic.version = 11 : i64} {
  func.func @_dense_kernel_direct(%arg0: i32, %arg1: i32, %arg2: i32, %arg3: memref<16x32xf32, #tpu.memory_space<vmem>>, %arg4: memref<64x32xf32, #tpu.memory_space<vmem>>, %arg5: memref<1x64xf32, #tpu.memory_space<vmem>>, %arg6: memref<16x64xf32, #tpu.memory_space<vmem>>) attributes {dimension_semantics = [#tpu.dimension_semantics<parallel>, #tpu.dimension_semantics<parallel>, #tpu.dimension_semantics<arbitrary>], iteration_bounds = array<i64: 1, 1, 1>, scalar_prefetch = 0 : i64, scratch_operands = 0 : i64, tpu.core_type = #tpu.core_type<tc>, window_params = [{transform_indices = @transform_0, window_bounds = array<i64: 16, 32>}, {transform_indices = @transform_1, window_bounds = array<i64: 64, 32>}, {transform_indices = @transform_2, window_bounds = array<i64: 1, 64>}, {transform_indices = @transform_3, window_bounds = array<i64: 16, 64>}]} {
    %c0_i32 = arith.constant 0 : i32
    %0 = arith.cmpi eq, %arg2, %c0_i32 : i32
    %1 = arith.extui %0 : i1 to i32
    %c0_i32_0 = arith.constant 0 : i32
    %2 = arith.cmpi ne, %1, %c0_i32_0 : i32
    scf.if %2 {
      %cst_10 = arith.constant 0.000000e+00 : f32
      %12 = vector.broadcast %cst_10 : f32 to vector<16x64xf32>
      %c0_11 = arith.constant 0 : index
      %c0_12 = arith.constant 0 : index
      %13 = vector.load %arg6[%c0_11, %c0_12] : memref<16x64xf32, #tpu.memory_space<vmem>>, vector<16x64xf32>
      tpu.vector_store %arg6[%c0_11, %c0_12], %12 {strides = array<i32>} : memref<16x64xf32, #tpu.memory_space<vmem>>, vector<16x64xf32>,
    } else {
    }
    %c0 = arith.constant 0 : index
    %c0_1 = arith.constant 0 : index
    %3 = vector.load %arg6[%c0, %c0_1] : memref<16x64xf32, #tpu.memory_space<vmem>>, vector<16x64xf32>
    %c0_2 = arith.constant 0 : index
    %c0_3 = arith.constant 0 : index
    %4 = vector.load %arg3[%c0_2, %c0_3] : memref<16x32xf32, #tpu.memory_space<vmem>>, vector<16x32xf32>
    %c0_4 = arith.constant 0 : index
    %c0_5 = arith.constant 0 : index
    %5 = vector.load %arg4[%c0_4, %c0_5] : memref<64x32xf32, #tpu.memory_space<vmem>>, vector<64x32xf32>
    %cst = arith.constant dense<0.000000e+00> : vector<16x64xf32>
    %6 = tpu.matmul %4, %5, %cst {dimension_numbers = #tpu.dot_dimension_numbers<[1], [1], [0], [0], [0, 0, 1, 0], [], []>} : vector<16x32xf32>, vector<64x32xf32>, vector<16x64xf32> -> vector<16x64xf32>
    %7 = arith.addf %3, %6 : vector<16x64xf32>
    %c0_6 = arith.constant 0 : index
    %c0_7 = arith.constant 0 : index
    %8 = vector.load %arg6[%c0_6, %c0_7] : memref<16x64xf32, #tpu.memory_space<vmem>>, vector<16x64xf32>
    tpu.vector_store %arg6[%c0_6, %c0_7], %7 {strides = array<i32>} : memref<16x64xf32, #tpu.memory_space<vmem>>, vector<16x64xf32>,
    %c0_i32_8 = arith.constant 0 : i32
    %9 = arith.cmpi eq, %arg2, %c0_i32_8 : i32
    %10 = arith.extui %9 : i1 to i32
    %c0_i32_9 = arith.constant 0 : i32
    %11 = arith.cmpi ne, %10, %c0_i32_9 : i32
    scf.if %11 {
      %c0_10 = arith.constant 0 : index
      %c0_11 = arith.constant 0 : index
      %12 = vector.load %arg6[%c0_10, %c0_11] : memref<16x64xf32, #tpu.memory_space<vmem>>, vector<16x64xf32>
      %c0_12 = arith.constant 0 : index
      %c0_13 = arith.constant 0 : index
      %13 = vector.load %arg5[%c0_12, %c0_13] : memref<1x64xf32, #tpu.memory_space<vmem>>, vector<1x64xf32>
      %14 = vector.broadcast %13 : vector<1x64xf32> to vector<16x64xf32>
      %15 = arith.addf %12, %14 : vector<16x64xf32>
      %cst_14 = arith.constant 0.000000e+00 : f32
      %16 = vector.broadcast %cst_14 : f32 to vector<16x64xf32>
      %17 = arith.maximumf %15, %16 : vector<16x64xf32>
      %c0_15 = arith.constant 0 : index
      %c0_16 = arith.constant 0 : index
      %18 = vector.load %arg6[%c0_15, %c0_16] : memref<16x64xf32, #tpu.memory_space<vmem>>, vector<16x64xf32>
      tpu.vector_store %arg6[%c0_15, %c0_16], %17 {strides = array<i32>} : memref<16x64xf32, #tpu.memory_space<vmem>>, vector<16x64xf32>,
    } else {
    }
    return
  }
  func.func @transform_0(%arg0: i32, %arg1: i32, %arg2: i32) -> (i32, i32) {
    %c0_i32 = arith.constant 0 : i32
    return %arg0, %arg2 : i32, i32
  }
  func.func @transform_1(%arg0: i32, %arg1: i32, %arg2: i32) -> (i32, i32) {
    %c0_i32 = arith.constant 0 : i32
    return %arg1, %arg2 : i32, i32
  }
  func.func @transform_2(%arg0: i32, %arg1: i32, %arg2: i32) -> (i32, i32) {
    %c0_i32 = arith.constant 0 : i32
    %c0_i32_0 = arith.constant 0 : i32
    return %c0_i32, %arg1 : i32, i32
  }
  func.func @transform_3(%arg0: i32, %arg1: i32, %arg2: i32) -> (i32, i32) {
    %c0_i32 = arith.constant 0 : i32
    return %arg0, %arg1 : i32, i32
  }
}

</mosaic_0001>

<llo_original>
// kernel: dense_layer_forward.1
$region0: #{dense_layer_forward.1}
  #allocation0 [shape = 'u32[]', space=smem, size = 0x4, offset = 0x4, fixed_abs, tag = 'smem constant byte address 0x4 - core index']
  #allocation1 [shape = 'u32[72,128]{1,0:T(1,128)}', space=vmem, size = 0x9000, scoped, tag = 'internal scratch']
  %s0 = inlined_call_operand.vmem [shape: f32[16,32], index: 0, kind: input, shape index: {}]
  %s1 = inlined_call_operand.vmem [shape: f32[64,32], index: 1, kind: input, shape index: {}]
  %s2 = inlined_call_operand.vmem [shape: f32[1,64], index: 2, kind: input, shape index: {}]
  %s3 = inlined_call_operand.hbm [shape: f32[16,64], index: 3, kind: output, shape index: {}]
  %s4 = sld [smem:[#allocation0]]
  $region30: #{dense_layer_forward.1} parent=0
    _
  %s6 = ssub.s32 1, %s4
  %s7 = scalar_select 0, %s6, %s4
  $region1: #{dense_layer_forward.1} parent=0
    #allocation2 [shape = 'u8[8192]{0}', space=vmem, size = 0x2000, scoped, tag = 'output window, operand 0, single buffered']
    #allocation3 [shape = 's32[1]{0}', space=sflag, size = 0x4, scoped, tag = 'scoped memory for dense_layer_forward.1']
    %8 = vsyncpa [#allocation3], 0
    // Predicated region
    $region2: #{dense_layer_forward.1} parent=1 // pred_check
      _
    $region3: #{dense_layer_forward.1} parent=1 // pred_check_branch
      %10 = sbr.rel (0) target = $region5
    $region4: #{dense_layer_forward.1} parent=1 // pred_region
      _
    $region5: #{dense_layer_forward.1} parent=1 // pred_fallthru
      _
    // Predicated region
    $region6: #{dense_layer_forward.1} parent=1 // pred_check
      _
    $region7: #{dense_layer_forward.1} parent=1 // pred_check_branch
      %12 = sbr.rel (0) target = $region9
    $region8: #{dense_layer_forward.1} parent=1 // pred_region
      _
    $region9: #{dense_layer_forward.1} parent=1 // pred_fallthru
      _
    // Predicated region
    $region10: #{dense_layer_forward.1} parent=1 // pred_check
      _
    $region11: #{dense_layer_forward.1} parent=1 // pred_check_branch
      %14 = sbr.rel (0) target = $region13
    $region12: #{dense_layer_forward.1} parent=1 // pred_region
      _
    $region13: #{dense_layer_forward.1} parent=1 // pred_fallthru
      _
    %p15 = scmp.eq.s32.totalorder 0, 0
    // Predicated region
    $region14: #{dense_layer_forward.1} parent=1 // pred_check
      %p16 = pneg %p15
    $region15: #{dense_layer_forward.1} parent=1 // pred_check_branch
      %18 = sbr.rel (%p16) target = $region17
    $region16: #{dense_layer_forward.1} parent=1 // pred_region
      %vm19 = vcmask 523264
      %20 = vst.msk [vmem:[#allocation2] sm:$0xff] %vm19, 0.0
      %21 = vst.msk [vmem:[#allocation2 + $0x8] sm:$0xff] %vm19, 0.0
    $region17: #{dense_layer_forward.1} parent=1 // pred_fallthru
      _
    %v22 = vld [vmem:[#allocation2] sm:$0xff]
    %v23 = vld [vmem:[#allocation2 + $0x8] sm:$0xff]
    %v24 = vld [vmem:[%s0] sm:$0xff]
    %v25 = vld [vmem:[%s0 + $0x8] sm:$0xff]
    %v26 = vld [vmem:[%s1] sm:$0xff]
    %v27 = vld [vmem:[%s1 + $0x8] sm:$0xff]
    %v28 = vld [vmem:[%s1 + $0x10] sm:$0xff]
    %v29 = vld [vmem:[%s1 + $0x18] sm:$0xff]
    %v30 = vld [vmem:[%s1 + $0x20] sm:$0xff]
    %v31 = vld [vmem:[%s1 + $0x28] sm:$0xff]
    %v32 = vld [vmem:[%s1 + $0x30] sm:$0xff]
    %v33 = vld [vmem:[%s1 + $0x38] sm:$0xff]
    %vm34 = vcmask 261120
    %v36 = vsel %vm34, %v24, 0
    %v39 = vsel %vm34, %v25, 0
    %v42 = vsel %vm34, %v26, 0
    %v45 = vsel %vm34, %v27, 0
    %v48 = vsel %vm34, %v28, 0
    %v51 = vsel %vm34, %v29, 0
    %v54 = vsel %vm34, %v30, 0
    %v57 = vsel %vm34, %v31, 0
    %v60 = vsel %vm34, %v32, 0
    %v63 = vsel %vm34, %v33, 0
    %65 = vmatpush.xpose.msra.mxu0 0.0
    %66 = vmatpush.xpose.msra.mxu0 0.0
    %67 = vmatpush.xpose.msra.mxu0 0.0
    %68 = vmatpush.xpose.msra.mxu0 0.0
    %69 = vmatpush.xpose.msra.mxu0 0.0
    %70 = vmatpush.xpose.msra.mxu0 0.0
    %71 = vmatpush.xpose.msra.mxu0 0.0
    %72 = vmatpush.xpose.msra.mxu0 0.0
    %73 = vmatpush.xpose.msra.mxu0 %v63
    %74 = vmatpush.xpose.msra.mxu0 %v60
    %75 = vmatpush.xpose.msra.mxu0 %v57
    %76 = vmatpush.xpose.msra.mxu0 %v54
    %77 = vmatpush.xpose.msra.mxu0 %v51
    %78 = vmatpush.xpose.msra.mxu0 %v48
    %79 = vmatpush.xpose.msra.mxu0 %v45
    %80 = vmatpush.xpose.msra.mxu0 %v42
    %81 = vmatmul.f32.gmra.mxu0 %v36
    %v82 = vpop.f32.mrf.mxu0
    %v83 = vadd.f32 0.0, %v82
    %84 = vmatmul.f32.gmra.mxu0 %v39
    %v85 = vpop.f32.mrf.mxu0
    %v86 = vadd.f32 0.0, %v85
    %87 = vdwg.mxu0
    %v88 = vadd.f32 %v22, %v83
    %v89 = vadd.f32 %v23, %v86
    %vm90 = vcmask 523264
    %91 = vst.msk [vmem:[#allocation2] sm:$0xff] %vm90, %v88
    %92 = vst.msk [vmem:[#allocation2 + $0x8] sm:$0xff] %vm90, %v89
    // Predicated region
    $region18: #{dense_layer_forward.1} parent=1 // pred_check
      %p93 = pneg %p15
    $region19: #{dense_layer_forward.1} parent=1 // pred_check_branch
      %95 = sbr.rel (%p93) target = $region21
    $region20: #{dense_layer_forward.1} parent=1 // pred_region
      %v96 = vld [vmem:[#allocation2] sm:$0xff]
      %v97 = vld [vmem:[#allocation2 + $0x8] sm:$0xff]
      %v98 = vld [vmem:[%s2] sm:$0x1]
      %v100 = vperm.slane %v98, 0
      %v102 = vadd.f32 %v96, %v100
      %v103 = vadd.f32 %v97, %v100
      %v104 = vmax.f32 %v102, 0.0
      %v105 = vmax.f32 %v103, 0.0
      %106 = vst.msk [vmem:[#allocation2] sm:$0xff] %vm90, %v104
      %107 = vst.msk [vmem:[#allocation2 + $0x8] sm:$0xff] %vm90, %v105
    $region21: #{dense_layer_forward.1} parent=1 // pred_fallthru
      _
    // Predicated region
    $region22: #{dense_layer_forward.1} parent=1 // pred_check
      _
    $region23: #{dense_layer_forward.1} parent=1 // pred_check_branch
      %109 = sbr.rel (0) target = $region25
    $region24: #{dense_layer_forward.1} parent=1 // pred_region
      %111 = vsyncadd [#allocation3], 0
      %s112 = sshll.u32 [#allocation2], 4
      %s113 = int_to_ptr.vmem [resolvable:$true] %s112
      %s114 = sshll.u32 %s3, 4
      %s115 = int_to_ptr.hbm [resolvable:$true] %s114
      %120 = dma.vmem_to_hbm [thread:$0]  %s113, 256, %s115, [#allocation3], 128, 128, 8
    $region25: #{dense_layer_forward.1} parent=1 // pred_fallthru
      _
    // Predicated region
    $region26: #{dense_layer_forward.1} parent=1 // pred_check
      _
    $region27: #{dense_layer_forward.1} parent=1 // pred_check_branch
      %122 = sbr.rel (0) target = $region29
    $region28: #{dense_layer_forward.1} parent=1 // pred_region
      %124 = dma.done [#allocation3], 256
    $region29: #{dense_layer_forward.1} parent=1 // pred_fallthru
      _
    %125 = vsyncpa [#allocation3], 1

</llo_original>
